<compile_context>
chip_gen: v5e
topology: v5e:2x2
jax: 0.10.0
libtpu: 0.0.40
codegen_flags: <defaults>
</compile_context>

<pallas_src>
import jax
import jax.numpy as jnp
from jax import lax
from jax.experimental import pallas as pl
from jax.experimental.pallas import tpu as pltpu


def _round_up(x, m):
    return ((x + m - 1) // m) * m


def fc_block_kernel(x_ref, w_ref, scale_ref, shift_ref, o_ref, acc_ref):
    """Tiled matmul (RHS in [P, K] layout) with fused BN scale/shift + ReLU."""
    k = pl.program_id(2)

    @pl.when(k == 0)
    def _():
        acc_ref[...] = jnp.zeros_like(acc_ref)

    # x tile [tm, tk] contracted with weight tile [tn, tk] along K.
    acc_ref[...] += lax.dot_general(
        x_ref[...],
        w_ref[...],
        dimension_numbers=(((1,), (1,)), ((), ())),
        preferred_element_type=jnp.float32,
    )

    @pl.when(k == pl.num_programs(2) - 1)
    def _():
        # Folded BN + bias: y = acc * scale + shift ; Dropout = identity (eval);
        # ReLU fused.
        y = acc_ref[...] * scale_ref[...] + shift_ref[...]
        o_ref[...] = jnp.maximum(y, 0.0).astype(o_ref.dtype)


def fc_block_forward(x, weight, bias, gamma, beta, running_mean, running_var,
                     eps=1e-5, compute_dtype=None):
    """FC_Block eval-mode forward: ReLU(BN(Linear(x))).

    x:      [N, inplanes]
    weight: [planes, inplanes]  (PyTorch nn.Linear layout, NOT transposed)
    """
    N, K = x.shape
    P, K2 = weight.shape
    assert K == K2, "weight/input feature mismatch"

    f32 = jnp.float32
    inv_std = lax.rsqrt(running_var.astype(f32) + jnp.asarray(eps, f32))
    scale = gamma.astype(f32) * inv_std                                    # [P]
    shift = (bias.astype(f32) - running_mean.astype(f32)) * scale + beta.astype(f32)

    # ---- tile selection (MXU-sized, VMEM-friendly on v5e/v6e/v7x) ----------
    N_pad = _round_up(N, 8)
    K_pad = _round_up(K, 128)
    P_pad = _round_up(P, 128)

    tm = min(N_pad, 256)
    tn = min(P_pad, 256)
    tk = K_pad if K_pad <= 2048 else 512

    N_pad = _round_up(N_pad, tm)
    P_pad = _round_up(P_pad, tn)
    K_pad = _round_up(K_pad, tk)

    if compute_dtype is not None:
        x = x.astype(compute_dtype)
        weight = weight.astype(compute_dtype)

    # Zero-pad to tile multiples; padded K contributes nothing to the dot and
    # padded rows/cols are sliced off below.
    if (N_pad, K_pad) != (N, K):
        x = jnp.pad(x, ((0, N_pad - N), (0, K_pad - K)))
    if (P_pad, K_pad) != (P, K):
        weight = jnp.pad(weight, ((0, P_pad - P), (0, K_pad - K)))
    if P_pad != P:
        scale = jnp.pad(scale, (0, P_pad - P))
        shift = jnp.pad(shift, (0, P_pad - P))
    scale = scale.reshape(1, P_pad)
    shift = shift.reshape(1, P_pad)

    grid = (N_pad // tm, P_pad // tn, K_pad // tk)

    out = pl.pallas_call(
        fc_block_kernel,
        out_shape=jax.ShapeDtypeStruct((N_pad, P_pad), jnp.float32),
        grid_spec=pltpu.PrefetchScalarGridSpec(
            num_scalar_prefetch=0,
            grid=grid,
            in_specs=[
                pl.BlockSpec((tm, tk), lambda i, j, k: (i, k)),   # x tile
                pl.BlockSpec((tn, tk), lambda i, j, k: (j, k)),   # weight [P, K] tile
                pl.BlockSpec((1, tn), lambda i, j, k: (0, j)),    # scale
                pl.BlockSpec((1, tn), lambda i, j, k: (0, j)),    # shift
            ],
            out_specs=pl.BlockSpec((tm, tn), lambda i, j, k: (i, j)),
            scratch_shapes=[pltpu.VMEM((tm, tn), jnp.float32)],
        ),
        compiler_params=pltpu.CompilerParams(
            dimension_semantics=("parallel", "parallel", "arbitrary")
        ),
    )(x, weight, scale, shift)

    if (N_pad, P_pad) != (N, P):
        out = out[:N, :P]
    return out


def fc_block_reference(x, weight, bias, gamma, beta, running_mean, running_var,
                       eps=1e-5):
    y = x @ weight.T + bias
    y = (y - running_mean) / jnp.sqrt(running_var + eps) * gamma + beta
    return jnp.maximum(y, 0.0)


if __name__ == "__main__":
    key = jax.random.PRNGKey(0)

    def make_inputs(k, batch, inplanes, planes):
        ks = jax.random.split(k, 7)
        x = jax.random.normal(ks[0], (batch, inplanes), dtype=jnp.float32)
        weight = jax.random.normal(ks[1], (planes, inplanes), dtype=jnp.float32) * 0.05
        bias = jax.random.normal(ks[2], (planes,), dtype=jnp.float32) * 0.1
        gamma = 1.0 + 0.1 * jax.random.normal(ks[3], (planes,), dtype=jnp.float32)
        beta = 0.1 * jax.random.normal(ks[4], (planes,), dtype=jnp.float32)
        running_mean = 0.1 * jax.random.normal(ks[5], (planes,), dtype=jnp.float32)
        running_var = 1.0 + 0.1 * jnp.abs(
            jax.random.normal(ks[6], (planes,), dtype=jnp.float32))
        return x, weight, bias, gamma, beta, running_mean, running_var

    k1, k2 = jax.random.split(key)

    # Aligned shapes (single-block grid).
    args = make_inputs(k1, 8, 256, 128)
    out = jax.block_until_ready(fc_block_forward(*args))
    ref = fc_block_reference(*args)
    assert out.shape == (8, 128)
    assert jnp.allclose(out, ref, atol=1e-4, rtol=1e-4), "mismatch vs reference (aligned)"

    # Ragged shapes exercise the zero-padding path.
    args2 = make_inputs(k2, 5, 96, 48)
    out2 = jax.block_until_ready(fc_block_forward(*args2))
    ref2 = fc_block_reference(*args2)
    assert out2.shape == (5, 48)
    assert jnp.allclose(out2, ref2, atol=1e-4, rtol=1e-4), "mismatch vs reference (ragged)"

    print("KERNEL_OK")
</pallas_src>

<mosaic_0001>
module attributes {stable_mosaic.version = 11 : i64} {
  func.func @fc_block_kernel(%arg0: i32, %arg1: i32, %arg2: i32, %arg3: memref<8x256xf32, #tpu.memory_space<vmem>>, %arg4: memref<128x256xf32, #tpu.memory_space<vmem>>, %arg5: memref<1x128xf32, #tpu.memory_space<vmem>>, %arg6: memref<1x128xf32, #tpu.memory_space<vmem>>, %arg7: memref<8x128xf32, #tpu.memory_space<vmem>>, %arg8: memref<8x128xf32, #tpu.memory_space<vmem>>) attributes {dimension_semantics = [#tpu.dimension_semantics<parallel>, #tpu.dimension_semantics<parallel>, #tpu.dimension_semantics<arbitrary>], iteration_bounds = array<i64: 1, 1, 1>, scalar_prefetch = 0 : i64, scratch_operands = 1 : i64, tpu.core_type = #tpu.core_type<tc>, window_params = [{transform_indices = @transform_0, window_bounds = array<i64: 8, 256>}, {transform_indices = @transform_1, window_bounds = array<i64: 128, 256>}, {transform_indices = @transform_2, window_bounds = array<i64: 1, 128>}, {transform_indices = @transform_3, window_bounds = array<i64: 1, 128>}, {transform_indices = @transform_4, window_bounds = array<i64: 8, 128>}]} {
    %c0_i32 = arith.constant 0 : i32
    %0 = arith.cmpi eq, %arg2, %c0_i32 : i32
    %1 = arith.extui %0 : i1 to i32
    %c0_i32_0 = arith.constant 0 : i32
    %2 = arith.cmpi ne, %1, %c0_i32_0 : i32
    scf.if %2 {
      %cst_10 = arith.constant 0.000000e+00 : f32
      %12 = vector.broadcast %cst_10 : f32 to vector<8x128xf32>
      %c0_11 = arith.constant 0 : index
      %c0_12 = arith.constant 0 : index
      %13 = vector.load %arg8[%c0_11, %c0_12] : memref<8x128xf32, #tpu.memory_space<vmem>>, vector<8x128xf32>
      tpu.vector_store %arg8[%c0_11, %c0_12], %12 {strides = array<i32>} : memref<8x128xf32, #tpu.memory_space<vmem>>, vector<8x128xf32>,
    } else {
    }
    %c0 = arith.constant 0 : index
    %c0_1 = arith.constant 0 : index
    %3 = vector.load %arg8[%c0, %c0_1] : memref<8x128xf32, #tpu.memory_space<vmem>>, vector<8x128xf32>
    %c0_2 = arith.constant 0 : index
    %c0_3 = arith.constant 0 : index
    %4 = vector.load %arg3[%c0_2, %c0_3] : memref<8x256xf32, #tpu.memory_space<vmem>>, vector<8x256xf32>
    %c0_4 = arith.constant 0 : index
    %c0_5 = arith.constant 0 : index
    %5 = vector.load %arg4[%c0_4, %c0_5] : memref<128x256xf32, #tpu.memory_space<vmem>>, vector<128x256xf32>
    %cst = arith.constant dense<0.000000e+00> : vector<8x128xf32>
    %6 = tpu.matmul %4, %5, %cst {dimension_numbers = #tpu.dot_dimension_numbers<[1], [1], [0], [0], [0, 0, 1, 0], [], []>} : vector<8x256xf32>, vector<128x256xf32>, vector<8x128xf32> -> vector<8x128xf32>
    %7 = arith.addf %3, %6 : vector<8x128xf32>
    %c0_6 = arith.constant 0 : index
    %c0_7 = arith.constant 0 : index
    %8 = vector.load %arg8[%c0_6, %c0_7] : memref<8x128xf32, #tpu.memory_space<vmem>>, vector<8x128xf32>
    tpu.vector_store %arg8[%c0_6, %c0_7], %7 {strides = array<i32>} : memref<8x128xf32, #tpu.memory_space<vmem>>, vector<8x128xf32>,
    %c0_i32_8 = arith.constant 0 : i32
    %9 = arith.cmpi eq, %arg2, %c0_i32_8 : i32
    %10 = arith.extui %9 : i1 to i32
    %c0_i32_9 = arith.constant 0 : i32
    %11 = arith.cmpi ne, %10, %c0_i32_9 : i32
    scf.if %11 {
      %c0_10 = arith.constant 0 : index
      %c0_11 = arith.constant 0 : index
      %12 = vector.load %arg8[%c0_10, %c0_11] : memref<8x128xf32, #tpu.memory_space<vmem>>, vector<8x128xf32>
      %c0_12 = arith.constant 0 : index
      %c0_13 = arith.constant 0 : index
      %13 = vector.load %arg5[%c0_12, %c0_13] : memref<1x128xf32, #tpu.memory_space<vmem>>, vector<1x128xf32>
      %14 = vector.broadcast %13 : vector<1x128xf32> to vector<8x128xf32>
      %15 = arith.mulf %12, %14 : vector<8x128xf32>
      %c0_14 = arith.constant 0 : index
      %c0_15 = arith.constant 0 : index
      %16 = vector.load %arg6[%c0_14, %c0_15] : memref<1x128xf32, #tpu.memory_space<vmem>>, vector<1x128xf32>
      %17 = vector.broadcast %16 : vector<1x128xf32> to vector<8x128xf32>
      %18 = arith.addf %15, %17 : vector<8x128xf32>
      %cst_16 = arith.constant 0.000000e+00 : f32
      %19 = vector.broadcast %cst_16 : f32 to vector<8x128xf32>
      %20 = arith.maximumf %18, %19 : vector<8x128xf32>
      %c0_17 = arith.constant 0 : index
      %c0_18 = arith.constant 0 : index
      %21 = vector.load %arg7[%c0_17, %c0_18] : memref<8x128xf32, #tpu.memory_space<vmem>>, vector<8x128xf32>
      tpu.vector_store %arg7[%c0_17, %c0_18], %20 {strides = array<i32>} : memref<8x128xf32, #tpu.memory_space<vmem>>, vector<8x128xf32>,
    } else {
    }
    return
  }
  func.func @transform_0(%arg0: i32, %arg1: i32, %arg2: i32) -> (i32, i32) {
    %c0_i32 = arith.constant 0 : i32
    return %arg0, %arg2 : i32, i32
  }
  func.func @transform_1(%arg0: i32, %arg1: i32, %arg2: i32) -> (i32, i32) {
    %c0_i32 = arith.constant 0 : i32
    return %arg1, %arg2 : i32, i32
  }
  func.func @transform_2(%arg0: i32, %arg1: i32, %arg2: i32) -> (i32, i32) {
    %c0_i32 = arith.constant 0 : i32
    %c0_i32_0 = arith.constant 0 : i32
    return %c0_i32, %arg1 : i32, i32
  }
  func.func @transform_3(%arg0: i32, %arg1: i32, %arg2: i32) -> (i32, i32) {
    %c0_i32 = arith.constant 0 : i32
    %c0_i32_0 = arith.constant 0 : i32
    return %c0_i32, %arg1 : i32, i32
  }
  func.func @transform_4(%arg0: i32, %arg1: i32, %arg2: i32) -> (i32, i32) {
    %c0_i32 = arith.constant 0 : i32
    return %arg0, %arg1 : i32, i32
  }
}

</mosaic_0001>

<llo_original>
// kernel: tpu_custom_call.1
$region0: #{tpu_custom_call.1}
  #allocation0 [shape = 'u32[]', space=smem, size = 0x4, offset = 0x4, fixed_abs, tag = 'smem constant byte address 0x4 - core index']
  #allocation1 [shape = 'u32[72,128]{1,0:T(1,128)}', space=vmem, size = 0x9000, scoped, tag = 'internal scratch']
  #allocation2 [shape = 'f32[8,128]{1,0:T(8,128)}', space=vmem, size = 0x1000, scoped, tag = 'scratch operand']
  %s0 = inlined_call_operand.hbm [shape: f32[8,256], index: 0, kind: input, shape index: {}]
  %s1 = inlined_call_operand.hbm [shape: f32[128,256], index: 1, kind: input, shape index: {}]
  %s2 = inlined_call_operand.vmem [shape: f32[1,128], index: 2, kind: input, shape index: {}]
  %s3 = inlined_call_operand.vmem [shape: f32[1,128], index: 3, kind: input, shape index: {}]
  %s4 = inlined_call_operand.hbm [shape: f32[8,128], index: 4, kind: output, shape index: {}]
  %s5 = sld [smem:[#allocation0]]
  $region42: #{tpu_custom_call.1} parent=0
    _
  %s7 = ssub.s32 1, %s5
  %s8 = scalar_select 0, %s7, %s5
  $region1: #{tpu_custom_call.1} parent=0
    #allocation3 [shape = 'u8[8192]{0}', space=vmem, size = 0x2000, scoped, tag = 'input window, operand 0, single buffered']
    #allocation4 [shape = 's32[1]{0}', space=sflag, size = 0x4, scoped, tag = 'scoped memory for tpu_custom_call.1']
    #allocation5 [shape = 's32[1]{0}', space=sflag, size = 0x4, scoped, tag = 'scoped memory for tpu_custom_call.1']
    #allocation6 [shape = 'u8[131072]{0}', space=vmem, size = 0x20000, scoped, tag = 'input window, operand 1, single buffered']
    #allocation7 [shape = 's32[1]{0}', space=sflag, size = 0x4, scoped, tag = 'scoped memory for tpu_custom_call.1']
    #allocation8 [shape = 'u8[4096]{0}', space=vmem, size = 0x1000, scoped, tag = 'output window, operand 0, single buffered']
    %9 = vsyncpa [#allocation4], 0
    %10 = vsyncpa [#allocation7], 0
    %11 = vsyncpa [#allocation5], 0
    // Predicated region
    $region2: #{tpu_custom_call.1} parent=1 // pred_check
      _
    $region3: #{tpu_custom_call.1} parent=1 // pred_check_branch
      %13 = sbr.rel (0) target = $region5
    $region4: #{tpu_custom_call.1} parent=1 // pred_region
      %15 = vsyncadd [#allocation4], 0
      %s17 = sshll.u32 %s0, 4
      %s18 = int_to_ptr.hbm [resolvable:$true] %s17
      %s19 = sshll.u32 [#allocation3], 4
      %s20 = int_to_ptr.vmem [resolvable:$true] %s19
      %22 = dma.hbm_to_vmem [thread:$0]  %s18, 256, %s20, [#allocation4]
    $region5: #{tpu_custom_call.1} parent=1 // pred_fallthru
      _
    // Predicated region
    $region6: #{tpu_custom_call.1} parent=1 // pred_check
      _
    $region7: #{tpu_custom_call.1} parent=1 // pred_check_branch
      %24 = sbr.rel (0) target = $region9
    $region8: #{tpu_custom_call.1} parent=1 // pred_region
      %26 = vsyncadd [#allocation7], 0
      %s27 = sshll.u32 %s1, 4
      %s28 = int_to_ptr.hbm [resolvable:$true] %s27
      %s29 = sshll.u32 [#allocation6], 4
      %s30 = int_to_ptr.vmem [resolvable:$true] %s29
      %35 = dma.hbm_to_vmem [thread:$0]  %s28, 4096, %s30, [#allocation7], 256, 256, 16
    $region9: #{tpu_custom_call.1} parent=1 // pred_fallthru
      _
    // Predicated region
    $region10: #{tpu_custom_call.1} parent=1 // pred_check
      _
    $region11: #{tpu_custom_call.1} parent=1 // pred_check_branch
      %37 = sbr.rel (0) target = $region13
    $region12: #{tpu_custom_call.1} parent=1 // pred_region
      _
    $region13: #{tpu_custom_call.1} parent=1 // pred_fallthru
      _
    // Predicated region
    $region14: #{tpu_custom_call.1} parent=1 // pred_check
      _
    $region15: #{tpu_custom_call.1} parent=1 // pred_check_branch
      %39 = sbr.rel (0) target = $region17
    $region16: #{tpu_custom_call.1} parent=1 // pred_region
      _
    $region17: #{tpu_custom_call.1} parent=1 // pred_fallthru
      _
    // Predicated region
    $region18: #{tpu_custom_call.1} parent=1 // pred_check
      _
    $region19: #{tpu_custom_call.1} parent=1 // pred_check_branch
      %41 = sbr.rel (0) target = $region21
    $region20: #{tpu_custom_call.1} parent=1 // pred_region
      %43 = dma.done [#allocation4], 256
    $region21: #{tpu_custom_call.1} parent=1 // pred_fallthru
      _
    // Predicated region
    $region22: #{tpu_custom_call.1} parent=1 // pred_check
      _
    $region23: #{tpu_custom_call.1} parent=1 // pred_check_branch
      %45 = sbr.rel (0) target = $region25
    $region24: #{tpu_custom_call.1} parent=1 // pred_region
      %47 = dma.done [#allocation7], 4096
    $region25: #{tpu_custom_call.1} parent=1 // pred_fallthru
      _
    %p48 = scmp.eq.s32.totalorder 0, 0
    // Predicated region
    $region26: #{tpu_custom_call.1} parent=1 // pred_check
      %p49 = pneg %p48
    $region27: #{tpu_custom_call.1} parent=1 // pred_check_branch
      %51 = sbr.rel (%p49) target = $region29
    $region28: #{tpu_custom_call.1} parent=1 // pred_region
      %52 = vst [vmem:[#allocation2] sm:$0xff] 0.0
    $region29: #{tpu_custom_call.1} parent=1 // pred_fallthru
      _
    %v53 = vld [vmem:[#allocation2] sm:$0xff]
    %v54 = vld [vmem:[#allocation3] sm:$0xff]
    %v55 = vld [vmem:[#allocation3 + $0x8] sm:$0xff]
    %v56 = vld [vmem:[#allocation6] sm:$0xff]
    %v57 = vld [vmem:[#allocation6 + $0x8] sm:$0xff]
    %v58 = vld [vmem:[#allocation6 + $0x10] sm:$0xff]
    %v59 = vld [vmem:[#allocation6 + $0x18] sm:$0xff]
    %v60 = vld [vmem:[#allocation6 + $0x20] sm:$0xff]
    %v61 = vld [vmem:[#allocation6 + $0x28] sm:$0xff]
    %v62 = vld [vmem:[#allocation6 + $0x30] sm:$0xff]
    %v63 = vld [vmem:[#allocation6 + $0x38] sm:$0xff]
    %v64 = vld [vmem:[#allocation6 + $0x40] sm:$0xff]
    %v65 = vld [vmem:[#allocation6 + $0x48] sm:$0xff]
    %v66 = vld [vmem:[#allocation6 + $0x50] sm:$0xff]
    %v67 = vld [vmem:[#allocation6 + $0x58] sm:$0xff]
    %v68 = vld [vmem:[#allocation6 + $0x60] sm:$0xff]
    %v69 = vld [vmem:[#allocation6 + $0x68] sm:$0xff]
    %v70 = vld [vmem:[#allocation6 + $0x70] sm:$0xff]
    %v71 = vld [vmem:[#allocation6 + $0x78] sm:$0xff]
    %v72 = vld [vmem:[#allocation6 + $0x80] sm:$0xff]
    %v73 = vld [vmem:[#allocation6 + $0x88] sm:$0xff]
    %v74 = vld [vmem:[#allocation6 + $0x90] sm:$0xff]
    %v75 = vld [vmem:[#allocation6 + $0x98] sm:$0xff]
    %v76 = vld [vmem:[#allocation6 + $0xa0] sm:$0xff]
    %v77 = vld [vmem:[#allocation6 + $0xa8] sm:$0xff]
    %v78 = vld [vmem:[#allocation6 + $0xb0] sm:$0xff]
    %v79 = vld [vmem:[#allocation6 + $0xb8] sm:$0xff]
    %v80 = vld [vmem:[#allocation6 + $0xc0] sm:$0xff]
    %v81 = vld [vmem:[#allocation6 + $0xc8] sm:$0xff]
    %v82 = vld [vmem:[#allocation6 + $0xd0] sm:$0xff]
    %v83 = vld [vmem:[#allocation6 + $0xd8] sm:$0xff]
    %v84 = vld [vmem:[#allocation6 + $0xe0] sm:$0xff]
    %v85 = vld [vmem:[#allocation6 + $0xe8] sm:$0xff]
    %v86 = vld [vmem:[#allocation6 + $0xf0] sm:$0xff]
    %v87 = vld [vmem:[#allocation6 + $0xf8] sm:$0xff]
    %88 = vmatpush.xpose.msra.mxu0 %v86
    %89 = vmatpush.xpose.msra.mxu0 %v84
    %90 = vmatpush.xpose.msra.mxu0 %v82
    %91 = vmatpush.xpose.msra.mxu0 %v80
    %92 = vmatpush.xpose.msra.mxu0 %v78
    %93 = vmatpush.xpose.msra.mxu0 %v76
    %94 = vmatpush.xpose.msra.mxu0 %v74
    %95 = vmatpush.xpose.msra.mxu0 %v72
    %96 = vmatpush.xpose.msra.mxu0 %v70
    %97 = vmatpush.xpose.msra.mxu0 %v68
    %98 = vmatpush.xpose.msra.mxu0 %v66
    %99 = vmatpush.xpose.msra.mxu0 %v64
    %100 = vmatpush.xpose.msra.mxu0 %v62
    %101 = vmatpush.xpose.msra.mxu0 %v60
    %102 = vmatpush.xpose.msra.mxu0 %v58
    %103 = vmatpush.xpose.msra.mxu0 %v56
    %104 = vmatmul.f32.gmra.mxu0 %v54
    %v105 = vpop.f32.mrf.mxu0
    %v106 = vadd.f32 0.0, %v105
    %107 = vdwg.mxu0
    %108 = vmatpush.xpose.msra.mxu0 %v87
    %109 = vmatpush.xpose.msra.mxu0 %v85
    %110 = vmatpush.xpose.msra.mxu0 %v83
    %111 = vmatpush.xpose.msra.mxu0 %v81
    %112 = vmatpush.xpose.msra.mxu0 %v79
    %113 = vmatpush.xpose.msra.mxu0 %v77
    %114 = vmatpush.xpose.msra.mxu0 %v75
    %115 = vmatpush.xpose.msra.mxu0 %v73
    %116 = vmatpush.xpose.msra.mxu0 %v71
    %117 = vmatpush.xpose.msra.mxu0 %v69
    %118 = vmatpush.xpose.msra.mxu0 %v67
    %119 = vmatpush.xpose.msra.mxu0 %v65
    %120 = vmatpush.xpose.msra.mxu0 %v63
    %121 = vmatpush.xpose.msra.mxu0 %v61
    %122 = vmatpush.xpose.msra.mxu0 %v59
    %123 = vmatpush.xpose.msra.mxu0 %v57
    %124 = vmatmul.f32.gmra.mxu0 %v55
    %v125 = vpop.f32.mrf.mxu0
    %v126 = vadd.f32 %v106, %v125
    %127 = vdwg.mxu0
    %v128 = vadd.f32 %v53, %v126
    %129 = vst [vmem:[#allocation2] sm:$0xff] %v128
    // Predicated region
    $region30: #{tpu_custom_call.1} parent=1 // pred_check
      %p130 = pneg %p48
    $region31: #{tpu_custom_call.1} parent=1 // pred_check_branch
      %132 = sbr.rel (%p130) target = $region33
    $region32: #{tpu_custom_call.1} parent=1 // pred_region
      %v133 = vld [vmem:[#allocation2] sm:$0xff]
      %v134 = vld [vmem:[%s2] sm:$0x1]
      %v136 = vperm.slane %v134, 0
      %v138 = vmul.f32 %v133, %v136
      %v139 = vld [vmem:[%s3] sm:$0x1]
      %v141 = vperm.slane %v139, 0
      %v143 = vadd.f32 %v138, %v141
      %v144 = vmax.f32 %v143, 0.0
      %145 = vst [vmem:[#allocation8] sm:$0xff] %v144
    $region33: #{tpu_custom_call.1} parent=1 // pred_fallthru
      _
    // Predicated region
    $region34: #{tpu_custom_call.1} parent=1 // pred_check
      _
    $region35: #{tpu_custom_call.1} parent=1 // pred_check_branch
      %147 = sbr.rel (0) target = $region37
    $region36: #{tpu_custom_call.1} parent=1 // pred_region
      %149 = vsyncadd [#allocation5], 0
      %s151 = sshll.u32 [#allocation8], 4
      %s152 = int_to_ptr.vmem [resolvable:$true] %s151
      %s153 = sshll.u32 %s4, 4
      %s154 = int_to_ptr.hbm [resolvable:$true] %s153
      %156 = dma.vmem_to_hbm [thread:$0]  %s152, 128, %s154, [#allocation5]
    $region37: #{tpu_custom_call.1} parent=1 // pred_fallthru
      _
    // Predicated region
    $region38: #{tpu_custom_call.1} parent=1 // pred_check
      _
    $region39: #{tpu_custom_call.1} parent=1 // pred_check_branch
      %158 = sbr.rel (0) target = $region41
    $region40: #{tpu_custom_call.1} parent=1 // pred_region
      %160 = dma.done [#allocation5], 128
    $region41: #{tpu_custom_call.1} parent=1 // pred_fallthru
      _
    %161 = vsyncpa [#allocation4], 1
    %162 = vsyncpa [#allocation7], 1
    %163 = vsyncpa [#allocation5], 1

</llo_original>
